<compile_context>
chip_gen: v6e
topology: v6e:2x2x1
jax: 0.10.0
libtpu: 0.0.40
codegen_flags: <defaults>
</compile_context>

<pallas_src>
import math

import jax
import jax.numpy as jnp
from jax.experimental import pallas as pl
from jax.experimental.pallas import tpu as pltpu


# ----------------------------- fused kernel ----------------------------------

def _clip_fused_kernel(text_ref, img_ref, wt_ref, bt_ref, wi_ref, bi_ref,
                       txt_out_ref, img_out_ref, acc_ref):
    """Grid: (K // tk,) over the flattened-pixel reduction axis.

       text_ref : (B, T, Dt)   whole text tensor (constant index -> resident)
       img_ref  : (B, tk)      K-tile of flattened NCHW pixels
       wt_ref   : (Dt, Dp)     text weight, zero-padded to Dp = 128*ceil(D/128)
       bt_ref   : (1, Dp)
       wi_ref   : (tk, Dp)     K-tile of image weight (zero-padded columns)
       bi_ref   : (1, Dp)
       outputs  : (B, Dp), (B, Dp)   L2-normalized features (padded cols = 0)
       acc_ref  : (B, Dp) f32 VMEM accumulator for the image matmul
    """
    k = pl.program_id(0)
    nk = pl.num_programs(0)

    @pl.when(k == 0)
    def _():
        acc_ref[...] = jnp.zeros_like(acc_ref)
        # Text path (done once): in-kernel mean-pool over T (XLU sublane
        # reduce), then a single small MXU matmul.
        inv_t = 1.0 / text_ref.shape[1]
        pooled = jnp.sum(text_ref[...], axis=1) * inv_t                 # (B, Dt)
        tf = jnp.dot(pooled, wt_ref[...],
                     preferred_element_type=jnp.float32) + bt_ref[...]  # (B, Dp)
        # Padded columns are exactly zero -> L2 norm over lanes unchanged.
        txt_out_ref[...] = tf * jax.lax.rsqrt(
            jnp.sum(tf * tf, axis=-1, keepdims=True))

    # Image path: K-tiled matmul accumulated in f32 VMEM scratch.
    acc_ref[...] += jnp.dot(img_ref[...], wi_ref[...],
                            preferred_element_type=jnp.float32)

    @pl.when(k == nk - 1)
    def _():
        imf = acc_ref[...] + bi_ref[...]
        img_out_ref[...] = imf * jax.lax.rsqrt(
            jnp.sum(imf * imf, axis=-1, keepdims=True))


# ------------------------ one-time parameter prep ----------------------------

def prepare_clip_params(params):
    """Zero-pad all feature columns to a lane-dense multiple of 128.

    Done ONCE (weights are static); the per-call forward does not touch weight
    bytes outside the kernel.  Padded columns (weights and biases) are zero, so
    the padded feature columns are exactly 0 and the L2 norm is unchanged.
    """
    D = params["w_txt"].shape[1]
    Dp = ((D + 127) // 128) * 128
    pad = Dp - D
    return {
        "w_txt": jnp.pad(params["w_txt"], ((0, 0), (0, pad))),
        "b_txt": jnp.pad(params["b_txt"], ((0, 0), (0, pad))),
        "w_img": jnp.pad(params["w_img"], ((0, 0), (0, pad))),
        "b_img": jnp.pad(params["b_img"], ((0, 0), (0, pad))),
        "logit_scale": params["logit_scale"],
        "d": D,
    }


# ----------------------------- wrapper ---------------------------------------

def clip_forward(text, images, prepared):
    """Pallas implementation of CLIPWrapper.forward.

    text   : (B, T, Dt) float32
    images : (B, C, H, W) float32 (NCHW)
    returns (text_features (B, D), image_features (B, D), logit_scale_exp ())
    """
    B, T, Dt = text.shape
    Bi, C, H, W = images.shape
    K = C * H * W
    D = prepared["d"]
    Dp = prepared["w_txt"].shape[1]

    # Row-major NCHW flatten == torch .view(B, -1).
    img_flat = images.reshape(Bi, K)

    # K-tile size: largest of these that divides K (K = 1024 here -> tk = 512).
    tk = K
    for cand in (512, 256, 128):
        if K % cand == 0:
            tk = cand
            break
    nk = K // tk

    txt_f, img_f = pl.pallas_call(
        _clip_fused_kernel,
        grid=(nk,),
        in_specs=[
            pl.BlockSpec((B, T, Dt), lambda k: (0, 0, 0)),   # resident, 1 fetch
            pl.BlockSpec((Bi, tk),   lambda k: (0, k)),      # streamed K-tiles
            pl.BlockSpec((Dt, Dp),   lambda k: (0, 0)),
            pl.BlockSpec((1, Dp),    lambda k: (0, 0)),
            pl.BlockSpec((tk, Dp),   lambda k: (k, 0)),      # streamed K-tiles
            pl.BlockSpec((1, Dp),    lambda k: (0, 0)),
        ],
        out_specs=[
            pl.BlockSpec((B, Dp),  lambda k: (0, 0)),
            pl.BlockSpec((Bi, Dp), lambda k: (0, 0)),
        ],
        out_shape=(
            jax.ShapeDtypeStruct((B, Dp), jnp.float32),
            jax.ShapeDtypeStruct((Bi, Dp), jnp.float32),
        ),
        scratch_shapes=[pltpu.VMEM((Bi, Dp), jnp.float32)],
        compiler_params=pltpu.CompilerParams(
            dimension_semantics=("arbitrary",)),   # K is a reduction axis
    )(text, img_flat, prepared["w_txt"], prepared["b_txt"],
      prepared["w_img"], prepared["b_img"])

    # Scalar exp is noise; keep it out of the kernel (review hygiene item).
    scale = jnp.exp(prepared["logit_scale"])
    return txt_f[:, :D], img_f[:, :D], scale


# --------------------------- reference (pure JAX) -----------------------------

def clip_forward_ref(text, images, params):
    B = text.shape[0]
    pooled = jnp.mean(text, axis=1)
    tf = pooled @ params["w_txt"] + params["b_txt"]
    imf = images.reshape(B, -1) @ params["w_img"] + params["b_img"]
    tf = tf / jnp.linalg.norm(tf, axis=-1, keepdims=True)
    imf = imf / jnp.linalg.norm(imf, axis=-1, keepdims=True)
    return tf, imf, jnp.exp(params["logit_scale"])


# ------------------------------ main ------------------------------------------

if __name__ == "__main__":
    # Small shapes consistent with the forward: batch=2, channels=4, spatial=16,
    # seq=8, text dim=32, embed dim=32.
    B, T, Dt = 2, 8, 32
    C, H, W = 4, 16, 16
    D = 32

    key = jax.random.PRNGKey(0)
    k_text, k_img, k_wt, k_bt, k_wi, k_bi = jax.random.split(key, 6)

    text = jax.random.normal(k_text, (B, T, Dt), dtype=jnp.float32)
    images = jax.random.normal(k_img, (B, C, H, W), dtype=jnp.float32)

    params = {
        "w_txt": 0.02 * jax.random.normal(k_wt, (Dt, D), dtype=jnp.float32),
        "b_txt": 0.02 * jax.random.normal(k_bt, (1, D), dtype=jnp.float32),
        "w_img": 0.02 * jax.random.normal(k_wi, (C * H * W, D), dtype=jnp.float32),
        "b_img": 0.02 * jax.random.normal(k_bi, (1, D), dtype=jnp.float32),
        # torch.ones([]) * log(1/0.07)
        "logit_scale": jnp.array(math.log(1.0 / 0.07), dtype=jnp.float32),
    }

    prepared = prepare_clip_params(params)   # one-time weight padding

    tf, imf, scale = clip_forward(text, images, prepared)
    jax.block_until_ready((tf, imf, scale))

    tf_r, imf_r, scale_r = clip_forward_ref(text, images, params)
    assert jnp.allclose(tf, tf_r, atol=1e-5), "text features mismatch"
    assert jnp.allclose(imf, imf_r, atol=1e-5), "image features mismatch"
    assert jnp.allclose(scale, scale_r, atol=1e-5), "logit scale mismatch"

    print("KERNEL_OK")
</pallas_src>

<mosaic_0001>
module attributes {stable_mosaic.version = 11 : i64} {
  func.func @_clip_fused_kernel(%arg0: i32, %arg1: memref<2x8x32xf32, #tpu.memory_space<vmem>>, %arg2: memref<2x512xf32, #tpu.memory_space<vmem>>, %arg3: memref<32x128xf32, #tpu.memory_space<vmem>>, %arg4: memref<1x128xf32, #tpu.memory_space<vmem>>, %arg5: memref<512x128xf32, #tpu.memory_space<vmem>>, %arg6: memref<1x128xf32, #tpu.memory_space<vmem>>, %arg7: memref<2x128xf32, #tpu.memory_space<vmem>>, %arg8: memref<2x128xf32, #tpu.memory_space<vmem>>, %arg9: memref<2x128xf32, #tpu.memory_space<vmem>>) attributes {dimension_semantics = [#tpu.dimension_semantics<arbitrary>], iteration_bounds = array<i64: 2>, scalar_prefetch = 0 : i64, scratch_operands = 1 : i64, tpu.core_type = #tpu.core_type<tc>, window_params = [{pipeline_mode = #tpu.pipeline_mode<synchronous>, transform_indices = @transform_0, window_bounds = array<i64: 2, 8, 32>}, {transform_indices = @transform_1, window_bounds = array<i64: 2, 512>}, {pipeline_mode = #tpu.pipeline_mode<synchronous>, transform_indices = @transform_2, window_bounds = array<i64: 32, 128>}, {pipeline_mode = #tpu.pipeline_mode<synchronous>, transform_indices = @transform_3, window_bounds = array<i64: 1, 128>}, {transform_indices = @transform_4, window_bounds = array<i64: 512, 128>}, {pipeline_mode = #tpu.pipeline_mode<synchronous>, transform_indices = @transform_5, window_bounds = array<i64: 1, 128>}, {pipeline_mode = #tpu.pipeline_mode<synchronous>, transform_indices = @transform_6, window_bounds = array<i64: 2, 128>}, {pipeline_mode = #tpu.pipeline_mode<synchronous>, transform_indices = @transform_7, window_bounds = array<i64: 2, 128>}]} {
    %c0_i32 = arith.constant 0 : i32
    %0 = arith.cmpi eq, %arg0, %c0_i32 : i32
    %1 = arith.extui %0 : i1 to i32
    %c0_i32_0 = arith.constant 0 : i32
    %2 = arith.cmpi ne, %1, %c0_i32_0 : i32
    scf.if %2 {
      %cst_9 = arith.constant 0.000000e+00 : f32
      %12 = vector.broadcast %cst_9 : f32 to vector<2x128xf32>
      %c0_10 = arith.constant 0 : index
      %c0_11 = arith.constant 0 : index
      %13 = vector.load %arg9[%c0_10, %c0_11] : memref<2x128xf32, #tpu.memory_space<vmem>>, vector<2x128xf32>
      tpu.vector_store %arg9[%c0_10, %c0_11], %12 {strides = array<i32>} : memref<2x128xf32, #tpu.memory_space<vmem>>, vector<2x128xf32>,
      %c0_12 = arith.constant 0 : index
      %c0_13 = arith.constant 0 : index
      %c0_14 = arith.constant 0 : index
      %14 = vector.load %arg1[%c0_12, %c0_13, %c0_14] : memref<2x8x32xf32, #tpu.memory_space<vmem>>, vector<2x8x32xf32>
      %cst_15 = arith.constant dense<0.000000e+00> : vector<2x32xf32>
      %15 = vector.multi_reduction <add>, %14, %cst_15 [1] : vector<2x8x32xf32> to vector<2x32xf32>
      %cst_16 = arith.constant 1.250000e-01 : f32
      %16 = vector.broadcast %cst_16 : f32 to vector<2x32xf32>
      %17 = arith.mulf %15, %16 : vector<2x32xf32>
      %c0_17 = arith.constant 0 : index
      %c0_18 = arith.constant 0 : index
      %18 = vector.load %arg3[%c0_17, %c0_18] : memref<32x128xf32, #tpu.memory_space<vmem>>, vector<32x128xf32>
      %cst_19 = arith.constant dense<0.000000e+00> : vector<2x128xf32>
      %19 = tpu.matmul %17, %18, %cst_19 {dimension_numbers = #tpu.dot_dimension_numbers<[1], [0], [0], [1], [0, 0, 1, 1], [], []>} : vector<2x32xf32>, vector<32x128xf32>, vector<2x128xf32> -> vector<2x128xf32>
      %c0_20 = arith.constant 0 : index
      %c0_21 = arith.constant 0 : index
      %20 = vector.load %arg4[%c0_20, %c0_21] : memref<1x128xf32, #tpu.memory_space<vmem>>, vector<1x128xf32>
      %21 = vector.broadcast %20 : vector<1x128xf32> to vector<2x128xf32>
      %22 = arith.addf %19, %21 : vector<2x128xf32>
      %23 = arith.mulf %22, %22 : vector<2x128xf32>
      %cst_22 = arith.constant dense<0.000000e+00> : vector<2xf32>
      %24 = vector.multi_reduction <add>, %23, %cst_22 [1] : vector<2x128xf32> to vector<2xf32>
      %25 = vector.shape_cast %24 : vector<2xf32> to vector<2x1xf32>
      %26 = math.rsqrt %25 : vector<2x1xf32>
      %27 = vector.broadcast %26 : vector<2x1xf32> to vector<2x128xf32>
      %28 = arith.mulf %22, %27 : vector<2x128xf32>
      %c0_23 = arith.constant 0 : index
      %c0_24 = arith.constant 0 : index
      %29 = vector.load %arg7[%c0_23, %c0_24] : memref<2x128xf32, #tpu.memory_space<vmem>>, vector<2x128xf32>
      tpu.vector_store %arg7[%c0_23, %c0_24], %28 {strides = array<i32>} : memref<2x128xf32, #tpu.memory_space<vmem>>, vector<2x128xf32>,
    } else {
    }
    %c0 = arith.constant 0 : index
    %c0_1 = arith.constant 0 : index
    %3 = vector.load %arg9[%c0, %c0_1] : memref<2x128xf32, #tpu.memory_space<vmem>>, vector<2x128xf32>
    %c0_2 = arith.constant 0 : index
    %c0_3 = arith.constant 0 : index
    %4 = vector.load %arg2[%c0_2, %c0_3] : memref<2x512xf32, #tpu.memory_space<vmem>>, vector<2x512xf32>
    %c0_4 = arith.constant 0 : index
    %c0_5 = arith.constant 0 : index
    %5 = vector.load %arg5[%c0_4, %c0_5] : memref<512x128xf32, #tpu.memory_space<vmem>>, vector<512x128xf32>
    %cst = arith.constant dense<0.000000e+00> : vector<2x128xf32>
    %6 = tpu.matmul %4, %5, %cst {dimension_numbers = #tpu.dot_dimension_numbers<[1], [0], [0], [1], [0, 0, 1, 1], [], []>} : vector<2x512xf32>, vector<512x128xf32>, vector<2x128xf32> -> vector<2x128xf32>
    %7 = arith.addf %3, %6 : vector<2x128xf32>
    %c0_6 = arith.constant 0 : index
    %c0_7 = arith.constant 0 : index
    %8 = vector.load %arg9[%c0_6, %c0_7] : memref<2x128xf32, #tpu.memory_space<vmem>>, vector<2x128xf32>
    tpu.vector_store %arg9[%c0_6, %c0_7], %7 {strides = array<i32>} : memref<2x128xf32, #tpu.memory_space<vmem>>, vector<2x128xf32>,
    %c1_i32 = arith.constant 1 : i32
    %9 = arith.cmpi eq, %arg0, %c1_i32 : i32
    %10 = arith.extui %9 : i1 to i32
    %c0_i32_8 = arith.constant 0 : i32
    %11 = arith.cmpi ne, %10, %c0_i32_8 : i32
    scf.if %11 {
      %c0_9 = arith.constant 0 : index
      %c0_10 = arith.constant 0 : index
      %12 = vector.load %arg9[%c0_9, %c0_10] : memref<2x128xf32, #tpu.memory_space<vmem>>, vector<2x128xf32>
      %c0_11 = arith.constant 0 : index
      %c0_12 = arith.constant 0 : index
      %13 = vector.load %arg6[%c0_11, %c0_12] : memref<1x128xf32, #tpu.memory_space<vmem>>, vector<1x128xf32>
      %14 = vector.broadcast %13 : vector<1x128xf32> to vector<2x128xf32>
      %15 = arith.addf %12, %14 : vector<2x128xf32>
      %16 = arith.mulf %15, %15 : vector<2x128xf32>
      %cst_13 = arith.constant dense<0.000000e+00> : vector<2xf32>
      %17 = vector.multi_reduction <add>, %16, %cst_13 [1] : vector<2x128xf32> to vector<2xf32>
      %18 = vector.shape_cast %17 : vector<2xf32> to vector<2x1xf32>
      %19 = math.rsqrt %18 : vector<2x1xf32>
      %20 = vector.broadcast %19 : vector<2x1xf32> to vector<2x128xf32>
      %21 = arith.mulf %15, %20 : vector<2x128xf32>
      %c0_14 = arith.constant 0 : index
      %c0_15 = arith.constant 0 : index
      %22 = vector.load %arg8[%c0_14, %c0_15] : memref<2x128xf32, #tpu.memory_space<vmem>>, vector<2x128xf32>
      tpu.vector_store %arg8[%c0_14, %c0_15], %21 {strides = array<i32>} : memref<2x128xf32, #tpu.memory_space<vmem>>, vector<2x128xf32>,
    } else {
    }
    return
  }
  func.func @transform_0(%arg0: i32) -> (i32, i32, i32) {
    %c0_i32 = arith.constant 0 : i32
    %c0_i32_0 = arith.constant 0 : i32
    %c0_i32_1 = arith.constant 0 : i32
    %c0_i32_2 = arith.constant 0 : i32
    return %c0_i32, %c0_i32_0, %c0_i32_1 : i32, i32, i32
  }
  func.func @transform_1(%arg0: i32) -> (i32, i32) {
    %c0_i32 = arith.constant 0 : i32
    %c0_i32_0 = arith.constant 0 : i32
    return %c0_i32, %arg0 : i32, i32
  }
  func.func @transform_2(%arg0: i32) -> (i32, i32) {
    %c0_i32 = arith.constant 0 : i32
    %c0_i32_0 = arith.constant 0 : i32
    %c0_i32_1 = arith.constant 0 : i32
    return %c0_i32, %c0_i32_0 : i32, i32
  }
  func.func @transform_3(%arg0: i32) -> (i32, i32) {
    %c0_i32 = arith.constant 0 : i32
    %c0_i32_0 = arith.constant 0 : i32
    %c0_i32_1 = arith.constant 0 : i32
    return %c0_i32, %c0_i32_0 : i32, i32
  }
  func.func @transform_4(%arg0: i32) -> (i32, i32) {
    %c0_i32 = arith.constant 0 : i32
    %c0_i32_0 = arith.constant 0 : i32
    return %arg0, %c0_i32 : i32, i32
  }
  func.func @transform_5(%arg0: i32) -> (i32, i32) {
    %c0_i32 = arith.constant 0 : i32
    %c0_i32_0 = arith.constant 0 : i32
    %c0_i32_1 = arith.constant 0 : i32
    return %c0_i32, %c0_i32_0 : i32, i32
  }
  func.func @transform_6(%arg0: i32) -> (i32, i32) {
    %c0_i32 = arith.constant 0 : i32
    %c0_i32_0 = arith.constant 0 : i32
    %c0_i32_1 = arith.constant 0 : i32
    return %c0_i32, %c0_i32_0 : i32, i32
  }
  func.func @transform_7(%arg0: i32) -> (i32, i32) {
    %c0_i32 = arith.constant 0 : i32
    %c0_i32_0 = arith.constant 0 : i32
    %c0_i32_1 = arith.constant 0 : i32
    return %c0_i32, %c0_i32_0 : i32, i32
  }
}

</mosaic_0001>

<llo_original>
// kernel: tpu_custom_call.1
$region0: #{tpu_custom_call.1}
  #allocation0 [shape = 'u32[]', space=smem, size = 0x4, offset = 0x4, fixed_abs, tag = 'smem constant byte address 0x4 - core index']
  #allocation1 [shape = 'u32[144,128]{1,0:T(1,128)}', space=vmem, size = 0x12000, scoped, tag = 'internal scratch']
  #allocation2 [shape = 'f32[2,128]{1,0:T(2,128)}', space=vmem, size = 0x400, scoped, tag = 'scratch operand']
  %s0 = inlined_call_operand.hbm [shape: f32[2,8,32], index: 0, kind: input, shape index: {}]
  %s1 = inlined_call_operand.hbm [shape: f32[2,1024], index: 1, kind: input, shape index: {}]
  %s2 = inlined_call_operand.hbm [shape: f32[32,128], index: 2, kind: input, shape index: {}]
  %s3 = inlined_call_operand.vmem [shape: f32[1,128], index: 3, kind: input, shape index: {}]
  %s4 = inlined_call_operand.hbm [shape: f32[1024,128], index: 4, kind: input, shape index: {}]
  %s5 = inlined_call_operand.vmem [shape: f32[1,128], index: 5, kind: input, shape index: {}]
  %s6 = inlined_call_operand.hbm [shape: f32[2,128], index: 6, kind: output, shape index: {0}]
  %s7 = inlined_call_operand.hbm [shape: f32[2,128], index: 7, kind: output, shape index: {1}]
  %8 = xla_tuple %s6, %s7
  %s9 = sld [smem:[#allocation0]]
  $region89: #{tpu_custom_call.1} parent=0
    _
  %s11 = ssub.s32 1, %s9
  %s12 = scalar_select 0, %s11, %s9
  $region1: #{tpu_custom_call.1} parent=0
    #allocation3 [shape = 'u8[8192]{0}', space=vmem, size = 0x2000, scoped, tag = 'input window, operand 0, single buffered']
    #allocation4 [shape = 's32[2]{0}', space=sflag, size = 0x8, scoped, tag = 'scoped memory for tpu_custom_call.1']
    #allocation5 [shape = 's32[2]{0}', space=sflag, size = 0x8, scoped, tag = 'scoped memory for tpu_custom_call.1']
    #allocation6 [shape = 'u8[8192]{0}', space=vmem, size = 0x2000, scoped, tag = 'input window, operand 1']
    #allocation7 [shape = 's32[2]{0}', space=sflag, size = 0x8, scoped, tag = 'scoped memory for tpu_custom_call.1']
    #allocation8 [shape = 'u8[16384]{0}', space=vmem, size = 0x4000, scoped, tag = 'input window, operand 2, single buffered']
    #allocation9 [shape = 'u8[524288]{0}', space=vmem, size = 0x80000, scoped, tag = 'input window, operand 4']
    #allocation10 [shape = 's32[2]{0}', space=sflag, size = 0x8, scoped, tag = 'scoped memory for tpu_custom_call.1']
    #allocation11 [shape = 'u8[1024]{0}', space=vmem, size = 0x400, scoped, tag = 'output window, operand 0, single buffered']
    #allocation12 [shape = 'u8[1024]{0}', space=vmem, size = 0x400, scoped, tag = 'output window, operand 1, single buffered']
    #allocation13 [shape = 's32[1]{0}', space=sflag, size = 0x4, scoped, tag = 'scoped memory for tpu_custom_call.1']
    %13 = vsyncpa [#allocation4], 0
    %14 = vsyncpa [#allocation7], 0
    %s15 = scalar_lea.sflag [#allocation7], 1
    %16 = vsyncpa %s15, 0
    %17 = vsyncpa [#allocation10], 0
    %s18 = scalar_lea.sflag [#allocation10], 1
    %19 = vsyncpa %s18, 0
    %20 = vsyncpa [#allocation5], 0
    %21 = vsyncpa [#allocation13], 0
    loop: start=0, step=1, limit=4
    $region2: #{tpu_custom_call.1} parent=1 // loop_pre_header
      _
    $region3: #{tpu_custom_call.1} parent=1 // loop_header
      %s23 = sphi 0, %s27
      %p24 = scmp.ge.s32.totalorder %s23, 4
      %s31 = sphi 0, %s31
      %s33 = sphi 0, %s31
      %s34 = sphi 0, %s33
      %s48 = sphi 0, %s34
      %s54 = sphi 0, %s56
      %s57 = sphi 0, %s54
      %s58 = sphi 0, %s57
      %s74 = sphi 0, %s58
      %s78 = sphi 0, %s78
      %s80 = sphi 0, %s78
      %s81 = sphi 0, %s80
      %s95 = sphi 0, %s81
      %s99 = sphi 0, %s99
      %s101 = sphi 0, %s99
      %s102 = sphi 0, %s101
      %s116 = sphi 0, %s102
      %s122 = sphi 0, %s124
      %s125 = sphi 0, %s122
      %s126 = sphi 0, %s125
      %s142 = sphi 0, %s126
      %s146 = sphi 0, %s146
      %s148 = sphi 0, %s146
      %s149 = sphi 0, %s148
      %s163 = sphi 0, %s149
      %s167 = sphi 0, %s167
      %s169 = sphi 0, %s167
      %s170 = sphi 0, %s169
      %s184 = sphi 0, %s170
      %s188 = sphi 0, %s188
      %s190 = sphi 0, %s188
      %s191 = sphi 0, %s190
      %s205 = sphi 0, %s191
    $region4: #{tpu_custom_call.1} parent=1 // loop_header_branch
      %26 = sbr.rel (%p24) target = $region8
    $region5: #{tpu_custom_call.1} parent=1 // loop_body
      %s28 = ssub.s32 %s23, 1
      %s29 = ssub.s32 %s23, 2
      %s30 = sadd.s32 %s23, 1
      %s32 = sadd.s32 %s31, 1
      %p35 = scmp.eq.s32.totalorder %s23, 1
      %p36 = scmp.ne.s32.totalorder %s31, %s33
      %p37 = scmp.eq.s32.totalorder %s23, 0
      %p38 = por %p36, %p37
      %p39 = scmp.ne.s32.totalorder %s31, %s33
      %p40 = scmp.eq.s32.totalorder %s28, 1
      %p41 = por %p39, %p40
      %p42 = scmp.ne.s32.totalorder %s33, %s34
      %p43 = scmp.eq.s32.totalorder %s28, 0
      %p44 = por %p42, %p43
      %p45 = scmp.ne.s32.totalorder %s33, %s34
      %p46 = scmp.eq.s32.totalorder %s29, 1
      %p47 = por %p45, %p46
      %p49 = scmp.ne.s32.totalorder %s34, %s48
      %p50 = scmp.eq.s32.totalorder %s29, 0
      %p51 = por %p49, %p50
      %s52 = ssub.s32 %s23, %s30
      %p53 = scmp.eq.s32.totalorder %s52, 0
      %s55 = sadd.s32 %s54, 1
      %s56 = scalar_select %p53, %s54, %s55
      %p59 = pneg %p53
      %p60 = scmp.eq.s32.totalorder %s23, 1
      %p61 = por %p59, %p60
      %p62 = scmp.ne.s32.totalorder %s54, %s57
      %p63 = scmp.eq.s32.totalorder %s23, 0
      %p64 = por %p62, %p63
      %p65 = scmp.ne.s32.totalorder %s54, %s57
      %p66 = scmp.eq.s32.totalorder %s28, 1
      %p67 = por %p65, %p66
      %p68 = scmp.ne.s32.totalorder %s57, %s58
      %p69 = scmp.eq.s32.totalorder %s28, 0
      %p70 = por %p68, %p69
      %p71 = scmp.ne.s32.totalorder %s57, %s58
      %p72 = scmp.eq.s32.totalorder %s29, 1
      %p73 = por %p71, %p72
      %p75 = scmp.ne.s32.totalorder %s58, %s74
      %p76 = scmp.eq.s32.totalorder %s29, 0
      %p77 = por %p75, %p76
      %s79 = sadd.s32 %s78, 1
      %p82 = scmp.eq.s32.totalorder %s23, 1
      %p83 = scmp.ne.s32.totalorder %s78, %s80
      %p84 = scmp.eq.s32.totalorder %s23, 0
      %p85 = por %p83, %p84
      %p86 = scmp.ne.s32.totalorder %s78, %s80
      %p87 = scmp.eq.s32.totalorder %s28, 1
      %p88 = por %p86, %p87
      %p89 = scmp.ne.s32.totalorder %s80, %s81
      %p90 = scmp.eq.s32.totalorder %s28, 0
      %p91 = por %p89, %p90
      %p92 = scmp.ne.s32.totalorder %s80, %s81
      %p93 = scmp.eq.s32.totalorder %s29, 1
      %p94 = por %p92, %p93
      %p96 = scmp.ne.s32.totalorder %s81, %s95
      %p97 = scmp.eq.s32.totalorder %s29, 0
      %p98 = por %p96, %p97
      %s100 = sadd.s32 %s99, 1
      %p103 = scmp.eq.s32.totalorder %s23, 1
      %p104 = scmp.ne.s32.totalorder %s99, %s101
      %p105 = scmp.eq.s32.totalorder %s23, 0
      %p106 = por %p104, %p105
      %p107 = scmp.ne.s32.totalorder %s99, %s101
      %p108 = scmp.eq.s32.totalorder %s28, 1
      %p109 = por %p107, %p108
      %p110 = scmp.ne.s32.totalorder %s101, %s102
      %p111 = scmp.eq.s32.totalorder %s28, 0
      %p112 = por %p110, %p111
      %p113 = scmp.ne.s32.totalorder %s101, %s102
      %p114 = scmp.eq.s32.totalorder %s29, 1
      %p115 = por %p113, %p114
      %p117 = scmp.ne.s32.totalorder %s102, %s116
      %p118 = scmp.eq.s32.totalorder %s29, 0
      %p119 = por %p117, %p118
      %s120 = ssub.s32 %s23, %s30
      %p121 = scmp.eq.s32.totalorder %s120, 0
      %s123 = sadd.s32 %s122, 1
      %s124 = scalar_select %p121, %s122, %s123
      %p127 = pneg %p121
      %p128 = scmp.eq.s32.totalorder %s23, 1
      %p129 = por %p127, %p128
      %p130 = scmp.ne.s32.totalorder %s122, %s125
      %p131 = scmp.eq.s32.totalorder %s23, 0
      %p132 = por %p130, %p131
      %p133 = scmp.ne.s32.totalorder %s122, %s125
      %p134 = scmp.eq.s32.totalorder %s28, 1
      %p135 = por %p133, %p134
      %p136 = scmp.ne.s32.totalorder %s125, %s126
      %p137 = scmp.eq.s32.totalorder %s28, 0
      %p138 = por %p136, %p137
      %p139 = scmp.ne.s32.totalorder %s125, %s126
      %p140 = scmp.eq.s32.totalorder %s29, 1
      %p141 = por %p139, %p140
      %p143 = scmp.ne.s32.totalorder %s126, %s142
      %p144 = scmp.eq.s32.totalorder %s29, 0
      %p145 = por %p143, %p144
      %s147 = sadd.s32 %s146, 1
      %p150 = scmp.eq.s32.totalorder %s23, 1
      %p151 = scmp.ne.s32.totalorder %s146, %s148
      %p152 = scmp.eq.s32.totalorder %s23, 0
      %p153 = por %p151, %p152
      %p154 = scmp.ne.s32.totalorder %s146, %s148
      %p155 = scmp.eq.s32.totalorder %s28, 1
      %p156 = por %p154, %p155
      %p157 = scmp.ne.s32.totalorder %s148, %s149
      %p158 = scmp.eq.s32.totalorder %s28, 0
      %p159 = por %p157, %p158
      %p160 = scmp.ne.s32.totalorder %s148, %s149
      %p161 = scmp.eq.s32.totalorder %s29, 1
      %p162 = por %p160, %p161
      %p164 = scmp.ne.s32.totalorder %s149, %s163
      %p165 = scmp.eq.s32.totalorder %s29, 0
      %p166 = por %p164, %p165
      %s168 = sadd.s32 %s167, 1
      %p171 = scmp.eq.s32.totalorder %s23, 1
      %p172 = scmp.ne.s32.totalorder %s167, %s169
      %p173 = scmp.eq.s32.totalorder %s23, 0
      %p174 = por %p172, %p173
      %p175 = scmp.ne.s32.totalorder %s167, %s169
      %p176 = scmp.eq.s32.totalorder %s28, 1
      %p177 = por %p175, %p176
      %p178 = scmp.ne.s32.totalorder %s169, %s170
      %p179 = scmp.eq.s32.totalorder %s28, 0
      %p180 = por %p178, %p179
      %p181 = scmp.ne.s32.totalorder %s169, %s170
      %p182 = scmp.eq.s32.totalorder %s29, 1
      %p183 = por %p181, %p182
      %p185 = scmp.ne.s32.totalorder %s170, %s184
      %p186 = scmp.eq.s32.totalorder %s29, 0
      %p187 = por %p185, %p186
      %s189 = sadd.s32 %s188, 1
      %p192 = scmp.eq.s32.totalorder %s23, 1
      %p193 = scmp.ne.s32.totalorder %s188, %s190
      %p194 = scmp.eq.s32.totalorder %s23, 0
      %p195 = por %p193, %p194
      %p196 = scmp.ne.s32.totalorder %s188, %s190
      %p197 = scmp.eq.s32.totalorder %s28, 1
      %p198 = por %p196, %p197
      %p199 = scmp.ne.s32.totalorder %s190, %s191
      %p200 = scmp.eq.s32.totalorder %s28, 0
      %p201 = por %p199, %p200
      %p202 = scmp.ne.s32.totalorder %s190, %s191
      %p203 = scmp.eq.s32.totalorder %s29, 1
      %p204 = por %p202, %p203
      %p206 = scmp.ne.s32.totalorder %s191, %s205
      %p207 = scmp.eq.s32.totalorder %s29, 0
      %p208 = por %p206, %p207
      %p209 = scmp.le.s32.totalorder 1, %s23
      %p210 = scmp.lt.s32.totalorder %s23, 3
      %p211 = pnand %p209, %p210
      %p212 = pneg %p211
      // Predicated region
      $region9: #{tpu_custom_call.1} parent=5 // pred_check
        _
      $region10: #{tpu_custom_call.1} parent=5 // pred_check_branch
        %214 = sbr.rel (%p211) target = $region12
      $region11: #{tpu_custom_call.1} parent=5 // pred_region
        %s215 = ssub.s32 %s23, 1
        // Predicated region
        $region13: #{tpu_custom_call.1} parent=11 // pred_check
          %p216 = pneg %p44
        $region14: #{tpu_custom_call.1} parent=11 // pred_check_branch
          %218 = sbr.rel (%p216) target = $region16
        $region15: #{tpu_custom_call.1} parent=11 // pred_region
          %s220 = ssub.s32 256, 256
          %221 = vsyncadd [#allocation4], %s220
          %s222 = sshll.u32 [#allocation3], 4
          %s223 = int_to_ptr.vmem [resolvable:$true] %s222
          %228 = dma.hbm_to_vmem [thread:$0]  %s0, 256, %s223, [#allocation4], 128, 128, 8
        $region16: #{tpu_custom_call.1} parent=11 // pred_fallthru
          _
        // Predicated region
        $region17: #{tpu_custom_call.1} parent=11 // pred_check
          %p229 = pneg %p91
        $region18: #{tpu_custom_call.1} parent=11 // pred_check_branch
          %231 = sbr.rel (%p229) target = $region20
        $region19: #{tpu_custom_call.1} parent=11 // pred_region
          %s233 = ssub.s32 512, 512
          %234 = vsyncadd [#allocation7], %s233
          %s235 = sshll.u32 [#allocation8], 4
          %s236 = int_to_ptr.vmem [resolvable:$true] %s235
          %241 = dma.hbm_to_vmem [thread:$0]  %s2, 512, %s236, [#allocation7], 128, 128, 8
        $region20: #{tpu_custom_call.1} parent=11 // pred_fallthru
          _
        // Predicated region
        $region21: #{tpu_custom_call.1} parent=11 // pred_check
          %p242 = pneg %p112
        $region22: #{tpu_custom_call.1} parent=11 // pred_check_branch
          %244 = sbr.rel (%p242) target = $region24
        $region23: #{tpu_custom_call.1} parent=11 // pred_region
          _
        $region24: #{tpu_custom_call.1} parent=11 // pred_fallthru
          _
        // Predicated region
        $region25: #{tpu_custom_call.1} parent=11 // pred_check
          %p245 = pneg %p159
        $region26: #{tpu_custom_call.1} parent=11 // pred_check_branch
          %247 = sbr.rel (%p245) target = $region28
        $region27: #{tpu_custom_call.1} parent=11 // pred_region
          _
        $region28: #{tpu_custom_call.1} parent=11 // pred_fallthru
          _
      $region12: #{tpu_custom_call.1} parent=5 // pred_fallthru
        _
      %p248 = scmp.lt.s32.totalorder %s23, 2
      // Predicated region
      $region29: #{tpu_custom_call.1} parent=5 // pred_check
        %p249 = pneg %p248
      $region30: #{tpu_custom_call.1} parent=5 // pred_check_branch
        %251 = sbr.rel (%p249) target = $region32
      $region31: #{tpu_custom_call.1} parent=5 // pred_region
        // Predicated region
        $region33: #{tpu_custom_call.1} parent=31 // pred_check
          %p252 = pneg %p64
        $region34: #{tpu_custom_call.1} parent=31 // pred_check_branch
          %254 = sbr.rel (%p252) target = $region36
        $region35: #{tpu_custom_call.1} parent=31 // pred_region
          %s255 = sand.u32 %s23, 1
          %s256 = scalar_lea.sflag [#allocation7], %s255
          %s257 = sand.u32 %s54, 1
          %s258 = smul.addr %s257, 8
          %s259 = scalar_lea.vmem [#allocation6], %s258
          %s260 = smul.u32 4, %s23
          %s262 = ssub.s32 128, 128
          %263 = vsyncadd %s256, %s262
          %s264 = smul.addr %s260, 32
          %s265 = scalar_lea.hbm %s1, %s264
          %s267 = sshll.u32 %s259, 4
          %s268 = int_to_ptr.vmem [resolvable:$true] %s267
          %270 = dma.hbm_to_vmem [thread:$0]  %s265, 128, %s268, %s256
        $region36: #{tpu_custom_call.1} parent=31 // pred_fallthru
          _
        // Predicated region
        $region37: #{tpu_custom_call.1} parent=31 // pred_check
          %p271 = pneg %p132
        $region38: #{tpu_custom_call.1} parent=31 // pred_check_branch
          %273 = sbr.rel (%p271) target = $region40
        $region39: #{tpu_custom_call.1} parent=31 // pred_region
          %s274 = sand.u32 %s122, 1
          %s275 = scalar_lea.sflag [#allocation10], %s274
          %s276 = sand.u32 %s122, 1
          %s277 = smul.addr %s276, 512
          %s278 = scalar_lea.vmem [#allocation9], %s277
          %s279 = smul.u32 64, %s23
          %s281 = ssub.s32 8192, 8192
          %282 = vsyncadd %s275, %s281
          %s283 = smul.addr %s279, 128
          %s284 = scalar_lea.hbm %s4, %s283
          %s285 = sshll.u32 %s278, 4
          %s286 = int_to_ptr.vmem [resolvable:$true] %s285
          %291 = dma.hbm_to_vmem [thread:$0]  %s284, 8192, %s286, %s275, 128, 128, 8
        $region40: #{tpu_custom_call.1} parent=31 // pred_fallthru
          _
      $region32: #{tpu_custom_call.1} parent=5 // pred_fallthru
        _
      %p292 = scmp.le.s32.totalorder 1, %s23
      %p293 = scmp.lt.s32.totalorder %s23, 3
      %p294 = pnand %p292, %p293
      %p295 = pneg %p294
      // Predicated region
      $region41: #{tpu_custom_call.1} parent=5 // pred_check
        _
      $region42: #{tpu_custom_call.1} parent=5 // pred_check_branch
        %297 = sbr.rel (%p294) target = $region44
      $region43: #{tpu_custom_call.1} parent=5 // pred_region
        %s298 = ssub.s32 %s23, 1
        // Predicated region
        $region45: #{tpu_custom_call.1} parent=43 // pred_check
          %p299 = pneg %p44
        $region46: #{tpu_custom_call.1} parent=43 // pred_check_branch
          %301 = sbr.rel (%p299) target = $region48
        $region47: #{tpu_custom_call.1} parent=43 // pred_region
          %302 = dma.done [#allocation4], 256
        $region48: #{tpu_custom_call.1} parent=43 // pred_fallthru
          _
        %s303 = sand.u32 %s28, 1
        %s304 = scalar_lea.sflag [#allocation7], %s303
        %s305 = sand.u32 %s57, 1
        %s306 = smul.addr %s305, 8
        %s307 = scalar_lea.vmem [#allocation6], %s306
        // Predicated region
        $region49: #{tpu_custom_call.1} parent=43 // pred_check
          %p308 = pneg %p70
        $region50: #{tpu_custom_call.1} parent=43 // pred_check_branch
          %310 = sbr.rel (%p308) target = $region52
        $region51: #{tpu_custom_call.1} parent=43 // pred_region
          %311 = dma.done %s304, 128
        $region52: #{tpu_custom_call.1} parent=43 // pred_fallthru
          _
        // Predicated region
        $region53: #{tpu_custom_call.1} parent=43 // pred_check
          %p312 = pneg %p91
        $region54: #{tpu_custom_call.1} parent=43 // pred_check_branch
          %314 = sbr.rel (%p312) target = $region56
        $region55: #{tpu_custom_call.1} parent=43 // pred_region
          %315 = dma.done [#allocation7], 512
        $region56: #{tpu_custom_call.1} parent=43 // pred_fallthru
          _
        %s316 = sand.u32 %s125, 1
        %s317 = scalar_lea.sflag [#allocation10], %s316
        %s318 = sand.u32 %s125, 1
        %s319 = smul.addr %s318, 512
        %s320 = scalar_lea.vmem [#allocation9], %s319
        // Predicated region
        $region57: #{tpu_custom_call.1} parent=43 // pred_check
          %p321 = pneg %p138
        $region58: #{tpu_custom_call.1} parent=43 // pred_check_branch
          %323 = sbr.rel (%p321) target = $region60
        $region59: #{tpu_custom_call.1} parent=43 // pred_region
          %324 = dma.done %s317, 8192
        $region60: #{tpu_custom_call.1} parent=43 // pred_fallthru
          _
        %p325 = pneg %p44
        %p326 = pneg %p41
        %s327 = sand.u32 %s28, 1
        %s328 = scalar_lea.sflag [#allocation7], %s327
        %s329 = sand.u32 %s57, 1
        %s330 = smul.addr %s329, 8
        %s331 = scalar_lea.vmem [#allocation6], %s330
        %p332 = pneg %p70
        %p333 = pneg %p67
        %p334 = pneg %p91
        %p335 = pneg %p88
        %p336 = pneg %p112
        %p337 = pneg %p109
        %s338 = sand.u32 %s125, 1
        %s339 = scalar_lea.sflag [#allocation10], %s338
        %s340 = sand.u32 %s125, 1
        %s341 = smul.addr %s340, 512
        %s342 = scalar_lea.vmem [#allocation9], %s341
        %p343 = pneg %p138
        %p344 = pneg %p135
        %p345 = pneg %p159
        %p346 = pneg %p156
        %p347 = pneg %p180
        %p348 = pneg %p177
        %p349 = pneg %p201
        %p350 = pneg %p198
        %s351 = smul.u32 4, %s28
        %s352 = smul.u32 64, %s28
        %p353 = scmp.eq.s32.totalorder %s28, 0
        // Predicated region
        $region61: #{tpu_custom_call.1} parent=43 // pred_check
          %p354 = pneg %p353
        $region62: #{tpu_custom_call.1} parent=43 // pred_check_branch
          %356 = sbr.rel (%p354) target = $region64
        $region63: #{tpu_custom_call.1} parent=43 // pred_region
          %357 = vst [vmem:[#allocation2] sm:$0x3] 0.0
          %v358 = vld [vmem:[#allocation3] sm:$0xff]
          %v359 = vld [vmem:[#allocation3 + $0x8] sm:$0xff]
          %vm360 = vcmask 261120
          %v361 = vsel %vm360, %v358, 0.0
          %v362 = vrot.slane %v361, 4
          %v363 = vadd.f32 %v361, %v362
          %v364 = vrot.slane %v363, 2
          %v365 = vadd.f32 %v363, %v364
          %v366 = vrot.slane %v365, 1
          %v367 = vadd.f32 %v365, %v366
          %v368 = vsel %vm360, %v359, 0.0
          %v369 = vrot.slane %v368, 4
          %v370 = vadd.f32 %v368, %v369
          %v371 = vrot.slane %v370, 2
          %v372 = vadd.f32 %v370, %v371
          %v373 = vrot.slane %v372, 1
          %v374 = vadd.f32 %v372, %v373
          %v375 = vmul.f32 %v367, 0.125
          %v376 = vmul.f32 %v374, 0.125
          %v377 = vld [vmem:[#allocation8] sm:$0xff]
          %v378 = vld [vmem:[#allocation8 + $0x8] sm:$0xff]
          %v379 = vld [vmem:[#allocation8 + $0x10] sm:$0xff]
          %v380 = vld [vmem:[#allocation8 + $0x18] sm:$0xff]
          %v381 = vld [vmem:[%s3] sm:$0x1]
          %v383 = vlaneseq
          %v384 = vshrl.u32 %v383, 7
          %v385 = vsub.s32 0, %v384
          %v386 = vrot.slane %v381, %v385
          %vm390 = vcmask 1041409
          %v391 = vsel %vm390, %v376, %v375
          %v392 = vsel %vm360, %v391, 0
          %394 = vmatprep.subr.mxu0 0.0
          %395 = vmatpush1.msra.mxu0 0.0
          %396 = vmatprep.subr.mxu0 0.0
          %397 = vmatpush1.msra.mxu0 0.0
          %398 = vmatprep.subr.mxu0 0.0
          %399 = vmatpush1.msra.mxu0 0.0
          %400 = vmatprep.subr.mxu0 0.0
          %401 = vmatpush1.msra.mxu0 0.0
          %402 = vmatprep.subr.mxu0 0.0
          %403 = vmatpush1.msra.mxu0 0.0
          %404 = vmatprep.subr.mxu0 0.0
          %405 = vmatpush1.msra.mxu0 0.0
          %406 = vmatprep.subr.mxu0 0.0
          %407 = vmatpush1.msra.mxu0 0.0
          %408 = vmatprep.subr.mxu0 0.0
          %409 = vmatpush1.msra.mxu0 0.0
          %410 = vmatprep.subr.mxu0 0.0
          %411 = vmatpush1.msra.mxu0 0.0
          %412 = vmatprep.subr.mxu0 0.0
          %413 = vmatpush1.msra.mxu0 0.0
          %414 = vmatprep.subr.mxu0 0.0
          %415 = vmatpush1.msra.mxu0 0.0
          %416 = vmatprep.subr.mxu0 0.0
          %417 = vmatpush1.msra.mxu0 0.0
          %418 = vmatprep.subr.mxu0 0.0
          %419 = vmatpush1.msra.mxu0 %v380
          %420 = vmatprep.subr.mxu0 0.0
          %421 = vmatpush1.msra.mxu0 %v379
          %422 = vmatprep.subr.mxu0 0.0
          %423 = vmatpush1.msra.mxu0 %v378
          %424 = vmatprep.subr.mxu0 0.0
          %425 = vmatpush1.msra.mxu0 %v377
          %426 = vmatprep.subr.mxu0 0.0
          %427 = vmatpush2.msra.mxu0 0.0
          %428 = vmatprep.subr.mxu0 0.0
          %429 = vmatpush2.msra.mxu0 0.0
          %430 = vmatprep.subr.mxu0 0.0
          %431 = vmatpush2.msra.mxu0 0.0
          %432 = vmatprep.subr.mxu0 0.0
          %433 = vmatpush2.msra.mxu0 0.0
          %434 = vmatprep.subr.mxu0 0.0
          %435 = vmatpush2.msra.mxu0 0.0
          %436 = vmatprep.subr.mxu0 0.0
          %437 = vmatpush2.msra.mxu0 0.0
          %438 = vmatprep.subr.mxu0 0.0
          %439 = vmatpush2.msra.mxu0 0.0
          %440 = vmatprep.subr.mxu0 0.0
          %441 = vmatpush2.msra.mxu0 0.0
          %442 = vmatprep.subr.mxu0 0.0
          %443 = vmatpush2.msra.mxu0 0.0
          %444 = vmatprep.subr.mxu0 0.0
          %445 = vmatpush2.msra.mxu0 0.0
          %446 = vmatprep.subr.mxu0 0.0
          %447 = vmatpush2.msra.mxu0 0.0
          %448 = vmatprep.subr.mxu0 0.0
          %449 = vmatpush2.msra.mxu0 0.0
          %450 = vmatprep.subr.mxu0 0.0
          %451 = vmatpush2.msra.mxu0 0.0
          %452 = vmatprep.subr.mxu0 0.0
          %453 = vmatpush2.msra.mxu0 0.0
          %454 = vmatprep.subr.mxu0 0.0
          %455 = vmatpush2.msra.mxu0 0.0
          %456 = vmatprep.subr.mxu0 0.0
          %457 = vmatpush2.msra.mxu0 0.0
          %458 = vmatprep.mubr.f32.mxu0 0.0
          %459 = vmatmul.mubr.f32.gmra.mxu0 %v392
          %v460 = vpop.f32.mrf.mxu0
          %v461 = vadd.f32 %v386, %v460
          %v462 = vpop.f32.mrf.mxu0
          %463 = vdwg.mxu0
          %v464 = vmul.f32 %v461, %v461
          %vm465 = vcmask 1041408
          %v466 = vsel %vm465, %v464, 0.0
          %467 = vadd.xlane.f32.xlu0 %v466
          %v468 = vpop.xlane.xlu0 %467
          %v469 = vrsqrt.pop %v468
          %v470 = vmul.f32 %v461, %v469
          %471 = vst [vmem:[#allocation11] sm:$0x3] %v470
        $region64: #{tpu_custom_call.1} parent=43 // pred_fallthru
          _
        %v472 = vld [vmem:[#allocation2] sm:$0x3]
        %v473 = vld [vmem:[%s307] sm:$0xff]
        %v474 = vld [vmem:[%s320] sm:$0xff]
        %v475 = vld [vmem:[%s320 + $0x8] sm:$0xff]
        %v476 = vld [vmem:[%s320 + $0x10] sm:$0xff]
        %v477 = vld [vmem:[%s320 + $0x18] sm:$0xff]
        %v478 = vld [vmem:[%s320 + $0x20] sm:$0xff]
        %v479 = vld [vmem:[%s320 + $0x28] sm:$0xff]
        %v480 = vld [vmem:[%s320 + $0x30] sm:$0xff]
        %v481 = vld [vmem:[%s320 + $0x38] sm:$0xff]
        %v482 = vld [vmem:[%s320 + $0x40] sm:$0xff]
        %v483 = vld [vmem:[%s320 + $0x48] sm:$0xff]
        %v484 = vld [vmem:[%s320 + $0x50] sm:$0xff]
        %v485 = vld [vmem:[%s320 + $0x58] sm:$0xff]
        %v486 = vld [vmem:[%s320 + $0x60] sm:$0xff]
        %v487 = vld [vmem:[%s320 + $0x68] sm:$0xff]
        %v488 = vld [vmem:[%s320 + $0x70] sm:$0xff]
        %v489 = vld [vmem:[%s320 + $0x78] sm:$0xff]
        %v490 = vld [vmem:[%s320 + $0x80] sm:$0xff]
        %v491 = vld [vmem:[%s320 + $0x88] sm:$0xff]
        %v492 = vld [vmem:[%s320 + $0x90] sm:$0xff]
        %v493 = vld [vmem:[%s320 + $0x98] sm:$0xff]
        %v494 = vld [vmem:[%s320 + $0xa0] sm:$0xff]
        %v495 = vld [vmem:[%s320 + $0xa8] sm:$0xff]
        %v496 = vld [vmem:[%s320 + $0xb0] sm:$0xff]
        %v497 = vld [vmem:[%s320 + $0xb8] sm:$0xff]
        %v498 = vld [vmem:[%s320 + $0xc0] sm:$0xff]
        %v499 = vld [vmem:[%s320 + $0xc8] sm:$0xff]
        %v500 = vld [vmem:[%s320 + $0xd0] sm:$0xff]
        %v501 = vld [vmem:[%s320 + $0xd8] sm:$0xff]
        %v502 = vld [vmem:[%s320 + $0xe0] sm:$0xff]
        %v503 = vld [vmem:[%s320 + $0xe8] sm:$0xff]
        %v504 = vld [vmem:[%s320 + $0xf0] sm:$0xff]
        %v505 = vld [vmem:[%s320 + $0xf8] sm:$0xff]
        %v506 = vld [vmem:[%s320 + $0x100] sm:$0xff]
        %v507 = vld [vmem:[%s320 + $0x108] sm:$0xff]
        %v508 = vld [vmem:[%s320 + $0x110] sm:$0xff]
        %v509 = vld [vmem:[%s320 + $0x118] sm:$0xff]
        %v510 = vld [vmem:[%s320 + $0x120] sm:$0xff]
        %v511 = vld [vmem:[%s320 + $0x128] sm:$0xff]
        %v512 = vld [vmem:[%s320 + $0x130] sm:$0xff]
        %v513 = vld [vmem:[%s320 + $0x138] sm:$0xff]
        %v514 = vld [vmem:[%s320 + $0x140] sm:$0xff]
        %v515 = vld [vmem:[%s320 + $0x148] sm:$0xff]
        %v516 = vld [vmem:[%s320 + $0x150] sm:$0xff]
        %v517 = vld [vmem:[%s320 + $0x158] sm:$0xff]
        %v518 = vld [vmem:[%s320 + $0x160] sm:$0xff]
        %v519 = vld [vmem:[%s320 + $0x168] sm:$0xff]
        %v520 = vld [vmem:[%s320 + $0x170] sm:$0xff]
        %v521 = vld [vmem:[%s320 + $0x178] sm:$0xff]
        %v522 = vld [vmem:[%s320 + $0x180] sm:$0xff]
        %v523 = vld [vmem:[%s320 + $0x188] sm:$0xff]
        %v524 = vld [vmem:[%s320 + $0x190] sm:$0xff]
        %v525 = vld [vmem:[%s320 + $0x198] sm:$0xff]
        %v526 = vld [vmem:[%s320 + $0x1a0] sm:$0xff]
        %v527 = vld [vmem:[%s320 + $0x1a8] sm:$0xff]
        %v528 = vld [vmem:[%s320 + $0x1b0] sm:$0xff]
        %v529 = vld [vmem:[%s320 + $0x1b8] sm:$0xff]
        %v530 = vld [vmem:[%s320 + $0x1c0] sm:$0xff]
        %v531 = vld [vmem:[%s320 + $0x1c8] sm:$0xff]
        %v532 = vld [vmem:[%s320 + $0x1d0] sm:$0xff]
        %v533 = vld [vmem:[%s320 + $0x1d8] sm:$0xff]
        %v534 = vld [vmem:[%s320 + $0x1e0] sm:$0xff]
        %v535 = vld [vmem:[%s320 + $0x1e8] sm:$0xff]
        %v536 = vld [vmem:[%s320 + $0x1f0] sm:$0xff]
        %v537 = vld [vmem:[%s320 + $0x1f8] sm:$0xff]
        %v539 = vcombine.high %v473, %v473
        %v541 = vunpack.c.l.s4 1983009808
        %v542 = vunpack.c.0.s8 %v541
        %v543 = vlaneseq
        %v544 = vshrl.u32 %v543, 7
        %v545 = vsub.s32 %v542, %v544
        %v546 = vrot.slane %v473, %v545
        %v548 = vunpack.c.l.s4 1983009808
        %v549 = vunpack.c.0.s8 %v548
        %v550 = vlaneseq
        %v551 = vshrl.u32 %v550, 7
        %v552 = vsub.s32 %v549, %v551
        %v553 = vrot.slane %v539, %v552
        %v554 = vcombine.high %v546, %v546
        %v555 = vcombine.high %v553, %v553
        %560 = vmatprep.subr.mxu0 0.0
        %561 = vmatpush1.msra.mxu0 %v489
        %562 = vmatprep.subr.mxu0 0.0
        %563 = vmatpush1.msra.mxu0 %v488
        %564 = vmatprep.subr.mxu0 0.0
        %565 = vmatpush1.msra.mxu0 %v487
        %566 = vmatprep.subr.mxu0 0.0
        %567 = vmatpush1.msra.mxu0 %v486
        %568 = vmatprep.subr.mxu0 0.0
        %569 = vmatpush1.msra.mxu0 %v485
        %570 = vmatprep.subr.mxu0 0.0
        %571 = vmatpush1.msra.mxu0 %v484
        %572 = vmatprep.subr.mxu0 0.0
        %573 = vmatpush1.msra.mxu0 %v483
        %574 = vmatprep.subr.mxu0 0.0
        %575 = vmatpush1.msra.mxu0 %v482
        %576 = vmatprep.subr.mxu0 0.0
        %577 = vmatpush1.msra.mxu0 %v481
        %578 = vmatprep.subr.mxu0 0.0
        %579 = vmatpush1.msra.mxu0 %v480
        %580 = vmatprep.subr.mxu0 0.0
        %581 = vmatpush1.msra.mxu0 %v479
        %582 = vmatprep.subr.mxu0 0.0
        %583 = vmatpush1.msra.mxu0 %v478
        %584 = vmatprep.subr.mxu0 0.0
        %585 = vmatpush1.msra.mxu0 %v477
        %586 = vmatprep.subr.mxu0 0.0
        %587 = vmatpush1.msra.mxu0 %v476
        %588 = vmatprep.subr.mxu0 0.0
        %589 = vmatpush1.msra.mxu0 %v475
        %590 = vmatprep.subr.mxu0 0.0
        %591 = vmatpush1.msra.mxu0 %v474
        %592 = vmatprep.subr.mxu0 0.0
        %593 = vmatpush2.msra.mxu0 %v505
        %594 = vmatprep.subr.mxu0 0.0
        %595 = vmatpush2.msra.mxu0 %v504
        %596 = vmatprep.subr.mxu0 0.0
        %597 = vmatpush2.msra.mxu0 %v503
        %598 = vmatprep.subr.mxu0 0.0
        %599 = vmatpush2.msra.mxu0 %v502
        %600 = vmatprep.subr.mxu0 0.0
        %601 = vmatpush2.msra.mxu0 %v501
        %602 = vmatprep.subr.mxu0 0.0
        %603 = vmatpush2.msra.mxu0 %v500
        %604 = vmatprep.subr.mxu0 0.0
        %605 = vmatpush2.msra.mxu0 %v499
        %606 = vmatprep.subr.mxu0 0.0
        %607 = vmatpush2.msra.mxu0 %v498
        %608 = vmatprep.subr.mxu0 0.0
        %609 = vmatpush2.msra.mxu0 %v497
        %610 = vmatprep.subr.mxu0 0.0
        %611 = vmatpush2.msra.mxu0 %v496
        %612 = vmatprep.subr.mxu0 0.0
        %613 = vmatpush2.msra.mxu0 %v495
        %614 = vmatprep.subr.mxu0 0.0
        %615 = vmatpush2.msra.mxu0 %v494
        %616 = vmatprep.subr.mxu0 0.0
        %617 = vmatpush2.msra.mxu0 %v493
        %618 = vmatprep.subr.mxu0 0.0
        %619 = vmatpush2.msra.mxu0 %v492
        %620 = vmatprep.subr.mxu0 0.0
        %621 = vmatpush2.msra.mxu0 %v491
        %622 = vmatprep.subr.mxu0 0.0
        %623 = vmatpush2.msra.mxu0 %v490
        %624 = vmatprep.mubr.f32.mxu0 %v554
        %625 = vmatmul.mubr.f32.gmra.mxu0 %v546
        %v626 = vpop.f32.mrf.mxu0
        %v627 = vadd.f32 0.0, %v626
        %v628 = vpop.f32.mrf.mxu0
        %629 = vdwg.mxu0
        %630 = vmatprep.subr.mxu0 0.0
        %631 = vmatpush1.msra.mxu0 %v521
        %632 = vmatprep.subr.mxu0 0.0
        %633 = vmatpush1.msra.mxu0 %v520
        %634 = vmatprep.subr.mxu0 0.0
        %635 = vmatpush1.msra.mxu0 %v519
        %636 = vmatprep.subr.mxu0 0.0
        %637 = vmatpush1.msra.mxu0 %v518
        %638 = vmatprep.subr.mxu0 0.0
        %639 = vmatpush1.msra.mxu0 %v517
        %640 = vmatprep.subr.mxu0 0.0
        %641 = vmatpush1.msra.mxu0 %v516
        %642 = vmatprep.subr.mxu0 0.0
        %643 = vmatpush1.msra.mxu0 %v515
        %644 = vmatprep.subr.mxu0 0.0
        %645 = vmatpush1.msra.mxu0 %v514
        %646 = vmatprep.subr.mxu0 0.0
        %647 = vmatpush1.msra.mxu0 %v513
        %648 = vmatprep.subr.mxu0 0.0
        %649 = vmatpush1.msra.mxu0 %v512
        %650 = vmatprep.subr.mxu0 0.0
        %651 = vmatpush1.msra.mxu0 %v511
        %652 = vmatprep.subr.mxu0 0.0
        %653 = vmatpush1.msra.mxu0 %v510
        %654 = vmatprep.subr.mxu0 0.0
        %655 = vmatpush1.msra.mxu0 %v509
        %656 = vmatprep.subr.mxu0 0.0
        %657 = vmatpush1.msra.mxu0 %v508
        %658 = vmatprep.subr.mxu0 0.0
        %659 = vmatpush1.msra.mxu0 %v507
        %660 = vmatprep.subr.mxu0 0.0
        %661 = vmatpush1.msra.mxu0 %v506
        %662 = vmatprep.subr.mxu0 0.0
        %663 = vmatpush2.msra.mxu0 %v537
        %664 = vmatprep.subr.mxu0 0.0
        %665 = vmatpush2.msra.mxu0 %v536
        %666 = vmatprep.subr.mxu0 0.0
        %667 = vmatpush2.msra.mxu0 %v535
        %668 = vmatprep.subr.mxu0 0.0
        %669 = vmatpush2.msra.mxu0 %v534
        %670 = vmatprep.subr.mxu0 0.0
        %671 = vmatpush2.msra.mxu0 %v533
        %672 = vmatprep.subr.mxu0 0.0
        %673 = vmatpush2.msra.mxu0 %v532
        %674 = vmatprep.subr.mxu0 0.0
        %675 = vmatpush2.msra.mxu0 %v531
        %676 = vmatprep.subr.mxu0 0.0
        %677 = vmatpush2.msra.mxu0 %v530
        %678 = vmatprep.subr.mxu0 0.0
        %679 = vmatpush2.msra.mxu0 %v529
        %680 = vmatprep.subr.mxu0 0.0
        %681 = vmatpush2.msra.mxu0 %v528
        %682 = vmatprep.subr.mxu0 0.0
        %683 = vmatpush2.msra.mxu0 %v527
        %684 = vmatprep.subr.mxu0 0.0
        %685 = vmatpush2.msra.mxu0 %v526
        %686 = vmatprep.subr.mxu0 0.0
        %687 = vmatpush2.msra.mxu0 %v525
        %688 = vmatprep.subr.mxu0 0.0
        %689 = vmatpush2.msra.mxu0 %v524
        %690 = vmatprep.subr.mxu0 0.0
        %691 = vmatpush2.msra.mxu0 %v523
        %692 = vmatprep.subr.mxu0 0.0
        %693 = vmatpush2.msra.mxu0 %v522
        %694 = vmatprep.mubr.f32.mxu0 %v555
        %695 = vmatmul.mubr.f32.gmra.mxu0 %v553
        %v696 = vpop.f32.mrf.mxu0
        %v697 = vadd.f32 %v627, %v696
        %v698 = vpop.f32.mrf.mxu0
        %699 = vdwg.mxu0
        %v700 = vadd.f32 %v472, %v697
        %701 = vst [vmem:[#allocation2] sm:$0x3] %v700
        %p702 = scmp.eq.s32.totalorder %s28, 1
        // Predicated region
        $region65: #{tpu_custom_call.1} parent=43 // pred_check
          %p703 = pneg %p702
        $region66: #{tpu_custom_call.1} parent=43 // pred_check_branch
          %705 = sbr.rel (%p703) target = $region68
        $region67: #{tpu_custom_call.1} parent=43 // pred_region
          %v706 = vld [vmem:[#allocation2] sm:$0x3]
          %v707 = vld [vmem:[%s5] sm:$0x1]
          %v709 = vlaneseq
          %v710 = vshrl.u32 %v709, 7
          %v711 = vsub.s32 0, %v710
          %v712 = vrot.slane %v707, %v711
          %v714 = vadd.f32 %v706, %v712
          %v715 = vmul.f32 %v714, %v714
          %vm716 = vcmask 1041408
          %v717 = vsel %vm716, %v715, 0.0
          %718 = vadd.xlane.f32.xlu0 %v717
          %v719 = vpop.xlane.xlu0 %718
          %v720 = vrsqrt.pop %v719
          %v721 = vmul.f32 %v714, %v720
          %722 = vst [vmem:[#allocation12] sm:$0x3] %v721
        $region68: #{tpu_custom_call.1} parent=43 // pred_fallthru
          _
        // Predicated region
        $region69: #{tpu_custom_call.1} parent=43 // pred_check
          %p723 = pneg %p177
        $region70: #{tpu_custom_call.1} parent=43 // pred_check_branch
          %725 = sbr.rel (%p723) target = $region72
        $region71: #{tpu_custom_call.1} parent=43 // pred_region
          %s727 = ssub.s32 32, 32
          %728 = vsyncadd [#allocation5], %s727
          %s730 = sshll.u32 [#allocation11], 4
          %s731 = int_to_ptr.vmem [resolvable:$true] %s730
          %733 = dma.vmem_to_hbm [thread:$0]  %s731, 32, %s6, [#allocation5]
        $region72: #{tpu_custom_call.1} parent=43 // pred_fallthru
          _
        // Predicated region
        $region73: #{tpu_custom_call.1} parent=43 // pred_check
          %p734 = pneg %p198
        $region74: #{tpu_custom_call.1} parent=43 // pred_check_branch
          %736 = sbr.rel (%p734) target = $region76
        $region75: #{tpu_custom_call.1} parent=43 // pred_region
          %s738 = ssub.s32 32, 32
          %739 = vsyncadd [#allocation13], %s738
          %s741 = sshll.u32 [#allocation12], 4
          %s742 = int_to_ptr.vmem [resolvable:$true] %s741
          %744 = dma.vmem_to_hbm [thread:$0]  %s742, 32, %s7, [#allocation13]
        $region76: #{tpu_custom_call.1} parent=43 // pred_fallthru
          _
        // Predicated region
        $region77: #{tpu_custom_call.1} parent=43 // pred_check
          %p745 = pneg %p177
        $region78: #{tpu_custom_call.1} parent=43 // pred_check_branch
          %747 = sbr.rel (%p745) target = $region80
        $region79: #{tpu_custom_call.1} parent=43 // pred_region
          %748 = dma.done [#allocation5], 32
        $region80: #{tpu_custom_call.1} parent=43 // pred_fallthru
          _
        // Predicated region
        $region81: #{tpu_custom_call.1} parent=43 // pred_check
          %p749 = pneg %p198
        $region82: #{tpu_custom_call.1} parent=43 // pred_check_branch
          %751 = sbr.rel (%p749) target = $region84
        $region83: #{tpu_custom_call.1} parent=43 // pred_region
          %752 = dma.done [#allocation13], 32
        $region84: #{tpu_custom_call.1} parent=43 // pred_fallthru
          _
      $region44: #{tpu_custom_call.1} parent=5 // pred_fallthru
        _
      %p753 = scmp.le.s32.totalorder 2, %s23
      // Predicated region
      $region85: #{tpu_custom_call.1} parent=5 // pred_check
        %p754 = pneg %p753
      $region86: #{tpu_custom_call.1} parent=5 // pred_check_branch
        %756 = sbr.rel (%p754) target = $region88
      $region87: #{tpu_custom_call.1} parent=5 // pred_region
        %s757 = ssub.s32 %s23, 2
      $region88: #{tpu_custom_call.1} parent=5 // pred_fallthru
        _
    $region6: #{tpu_custom_call.1} parent=1 // loop_footer
      %s27 = sadd.s32 1, %s23
    $region7: #{tpu_custom_call.1} parent=1 // loop_footer_branch
      %22 = sbr.rel target = $region3
    $region8: #{tpu_custom_call.1} parent=1 // loop_exit
      _
    %758 = vsyncpa [#allocation4], 1
    %s759 = scalar_lea.sflag [#allocation4], 1
    %760 = vsyncpa %s759, 1
    %761 = vsyncpa [#allocation7], 1
    %s762 = scalar_lea.sflag [#allocation7], 1
    %763 = vsyncpa %s762, 1
    %764 = vsyncpa [#allocation10], 1
    %s765 = scalar_lea.sflag [#allocation10], 1
    %766 = vsyncpa %s765, 1
    %767 = vsyncpa [#allocation5], 1
    %s768 = scalar_lea.sflag [#allocation5], 1
    %769 = vsyncpa %s768, 1
    %770 = vsyncpa [#allocation13], 1

</llo_original>
